<compile_context>
chip_gen: v7x
topology: tpu7x:2x2x1
jax: 0.10.0
libtpu: 0.0.40
codegen_flags: <defaults>
</compile_context>

<pallas_src>
import jax
import jax.numpy as jnp
from jax.experimental import pallas as pl
from jax.experimental.pallas import tpu as pltpu


def _round_up(x, m):
    return (x + m - 1) // m * m


def _cdiv(a, b):
    return -(-a // b)


def _vmem_capacity_bytes():
    try:
        return int(pltpu.get_tpu_info().vmem_capacity_bytes)
    except Exception:
        return 64 * 1024 * 1024  # conservative (v7x per-TensorCore)


# --------------------------------------------------------------------------------
# Kernel body: one (tm, tn) output tile = (tm, K) @ (K, tn) + bias, f32 accumulate.
# --------------------------------------------------------------------------------
def _patch_embed_kernel(x_ref, w_ref, b_ref, o_ref):
    acc = jnp.dot(x_ref[...], w_ref[...], preferred_element_type=jnp.float32)
    o_ref[...] = (acc + b_ref[...]).astype(o_ref.dtype)


def _pick_tiles(N, K, Ep, in_bytes, w_bytes, out_bytes, budget):
    """Choose (tm, tn) for the (N,K) x (K,Ep) GEMM under a VMEM budget."""
    n_rows8 = _round_up(max(N, 1), 8)
    # Keep >= 8 row steps when the problem has that many rows at the minimum tile:
    # needed for megacore sharding (v7x, 2 TCs) and DMA/compute double-buffering.
    min_row_steps = min(8, _cdiv(N, 8))

    def footprint(tm, tn):
        # Double-buffered activation + output tiles; weight/bias counted
        # double-buffered (Pallas default pipelining; constant index map means
        # only one DMA actually happens, but both buffers are allocated).
        return (2 * tm * K * in_bytes
                + 2 * tm * tn * out_bytes
                + 2 * K * tn * w_bytes
                + 2 * tn * 4)

    tn_cands = [Ep] + [t for t in (2048, 1536, 1024, 768, 512, 384, 256, 128)
                       if t < Ep and Ep % t == 0]
    tm_cands = (1024, 768, 512, 384, 256, 128, 64, 32, 16, 8)

    best = None  # (key, tm, tn); key = (min(tm,256), tn, tm)
    for tn in tn_cands:
        for tm in tm_cands:
            if tm > n_rows8:
                continue
            if _cdiv(N, tm) < min_row_steps:
                continue
            if footprint(tm, tn) > budget:
                continue
            key = (min(tm, 256), tn, tm)
            if best is None or key > best[0]:
                best = (key, tm, tn)
            break  # descending tm: first fit is the largest valid tm for this tn
    if best is None:
        # Last-resort minimal tiles; may still need a large vmem limit for huge K.
        return 8, 128, footprint(8, 128)
    _, tm, tn = best
    return tm, tn, footprint(tm, tn)


def _patch_embed_gemm(patches, w_mat, bias2d, *, out_dtype):
    """patches: (N, K), w_mat: (K, Ep) lane-padded, bias2d: (1, Ep) f32 -> (N, Ep)."""
    N, K = patches.shape
    Kw, Ep = w_mat.shape
    assert Kw == K and Ep % 128 == 0

    in_bytes = jnp.dtype(patches.dtype).itemsize
    w_bytes = jnp.dtype(w_mat.dtype).itemsize
    out_bytes = jnp.dtype(out_dtype).itemsize

    cap = _vmem_capacity_bytes()
    budget = (cap * 3) // 4  # ~75% of real VMEM, generation aware
    tm, tn, fp = _pick_tiles(N, K, Ep, in_bytes, w_bytes, out_bytes, budget)

    n_row_steps = _cdiv(N, tm)        # ragged last row block handled by Pallas
    n_col_steps = Ep // tn            # tn divides Ep by construction

    cost = pl.CostEstimate(
        flops=2 * N * K * Ep,
        transcendentals=0,
        bytes_accessed=(n_col_steps * N * K * in_bytes
                        + K * Ep * w_bytes
                        + N * Ep * out_bytes),
    )

    vmem_limit = int(min(max(fp + (8 << 20), 32 << 20), (cap * 9) // 10))

    return pl.pallas_call(
        _patch_embed_kernel,
        out_shape=jax.ShapeDtypeStruct((N, Ep), out_dtype),
        grid_spec=pltpu.PrefetchScalarGridSpec(
            num_scalar_prefetch=0,
            # Column stripes outermost: the (K, tn) weight stripe is DMA'd once per
            # stripe and stays resident while the row tiles stream past it.
            grid=(n_col_steps, n_row_steps),
            in_specs=[
                pl.BlockSpec((tm, K), lambda j, i: (i, 0)),
                pl.BlockSpec((K, tn), lambda j, i: (0, j)),
                pl.BlockSpec((1, tn), lambda j, i: (0, j)),
            ],
            out_specs=pl.BlockSpec((tm, tn), lambda j, i: (i, j)),
        ),
        compiler_params=pltpu.CompilerParams(
            # Both axes are independent (no reduction): shard across TCs on v7x.
            dimension_semantics=("parallel", "parallel"),
            vmem_limit_bytes=vmem_limit,
        ),
        cost_estimate=cost,
    )(patches, w_mat, bias2d)


# --------------------------------------------------------------------------------
# Parameter prep (run once at init, not per forward).
# --------------------------------------------------------------------------------
def prepare_patch_embed_params(conv_weight, conv_bias, *, compute_dtype=None):
    """conv_weight: (E, C, kD, kH, kW) PyTorch layout; conv_bias: (E,).

    Returns (w_mat, bias2d): (K, Ep) projection with lane-dense padded columns and
    (1, Ep) f32 bias.  compute_dtype=jnp.bfloat16 stores the weight bf16 (half the
    resident VMEM, 2x MXU rate); accumulation in the kernel stays f32.
    """
    E, C, kD, kH, kW = conv_weight.shape
    K = C * kD * kH * kW

    # Lane-dense output columns: multiple of 128 always; prefer 256 (v6e/v7x MXU
    # tile width) when the extra padding is small.
    ep128 = _round_up(E, 128)
    ep256 = _round_up(E, 256)
    Ep = ep256 if (ep256 - E) * 8 <= max(E, 256) else ep128

    w = conv_weight.reshape(E, K).T            # (K, E), K ordered (c, kd, kh, kw)
    b = conv_bias
    if Ep != E:
        w = jnp.pad(w, ((0, 0), (0, Ep - E)))  # zero columns -> sliced off later
        b = jnp.pad(b, (0, Ep - E))
    if compute_dtype is not None:
        w = w.astype(compute_dtype)
    bias2d = b.reshape(1, Ep).astype(jnp.float32)  # hoisted cast (f32 accumulate)
    return w, bias2d


def patch_embed_3d_apply(x, w_mat, bias2d, *, embed_dim, kernel_size, out_dtype=None):
    """x: (B, C, D, H, W) NCDHW -> (B, D', H', W', embed_dim)."""
    B, C, D, H, W = x.shape
    kD, kH, kW = kernel_size
    if D % kD or H % kH or W % kW:
        raise ValueError("spatial dims must be divisible by kernel_size "
                         "(kernel == stride, padding == 0)")
    Dp, Hp, Wp = D // kD, H // kH, W // kW
    K = C * kD * kH * kW
    assert w_mat.shape[0] == K

    # TODO(synk): fuse this im2col into the Pallas kernel to save one HBM round trip.
    xp = x.reshape(B, C, Dp, kD, Hp, kH, Wp, kW)
    xp = xp.transpose(0, 2, 4, 6, 1, 3, 5, 7)      # (B, Dp, Hp, Wp, C, kD, kH, kW)
    patches = xp.reshape(B * Dp * Hp * Wp, K)      # (N, K) — one fused XLA copy
    if patches.dtype != w_mat.dtype:
        # Cast folds into the im2col copy: halves its HBM write+read when bf16.
        patches = patches.astype(w_mat.dtype)

    out = _patch_embed_gemm(patches, w_mat, bias2d, out_dtype=out_dtype or x.dtype)

    if out.shape[1] != embed_dim:
        out = out[:, :embed_dim]                   # drop lane-padding columns
    return out.reshape(B, Dp, Hp, Wp, embed_dim)


def patch_embed_3d(x, conv_weight, conv_bias, kernel_size=None, *,
                   compute_dtype=None, out_dtype=None):
    """Convenience wrapper matching the PyTorch module's forward (prep + apply)."""
    if kernel_size is None:
        kernel_size = tuple(conv_weight.shape[2:])
    w_mat, bias2d = prepare_patch_embed_params(conv_weight, conv_bias,
                                               compute_dtype=compute_dtype)
    return patch_embed_3d_apply(x, w_mat, bias2d, embed_dim=conv_weight.shape[0],
                                kernel_size=kernel_size, out_dtype=out_dtype)


if __name__ == "__main__":
    # Small shapes consistent with the module's forward.
    B, C = 2, 2
    D = H = W = 8
    kernel_size = (4, 4, 4)            # kernel == stride, padding == 0
    embed_dim = 32

    key = jax.random.PRNGKey(0)
    kx, kw_, kb = jax.random.split(key, 3)
    x = jax.random.normal(kx, (B, C, D, H, W), dtype=jnp.float32)
    conv_weight = jax.random.normal(
        kw_, (embed_dim, C, *kernel_size), dtype=jnp.float32) * 0.02
    conv_bias = jax.random.normal(kb, (embed_dim,), dtype=jnp.float32) * 0.02

    # Hoisted weight prep (done once, outside the per-step jit).
    w_mat, bias2d = prepare_patch_embed_params(conv_weight, conv_bias)
    fwd = jax.jit(lambda xx, w, b: patch_embed_3d_apply(
        xx, w, b, embed_dim=embed_dim, kernel_size=kernel_size))
    out = fwd(x, w_mat, bias2d)
    jax.block_until_ready(out)

    # Reference: lax conv with the same semantics as nn.Conv3d + permute.
    ref = jax.lax.conv_general_dilated(
        x, conv_weight, window_strides=kernel_size, padding="VALID",
        dimension_numbers=("NCDHW", "OIDHW", "NDHWC"))
    ref = ref + conv_bias.reshape(1, 1, 1, 1, embed_dim)
    assert out.shape == (B, D // 4, H // 4, W // 4, embed_dim)
    assert jnp.allclose(out, ref, atol=1e-4, rtol=1e-4)

    # Optional bf16 compute path (halves HBM traffic / doubles MXU rate); f32 accum.
    w_bf16, b_bf16 = prepare_patch_embed_params(conv_weight, conv_bias,
                                                compute_dtype=jnp.bfloat16)
    out_bf16 = jax.jit(lambda xx, w, b: patch_embed_3d_apply(
        xx, w, b, embed_dim=embed_dim, kernel_size=kernel_size))(x, w_bf16, b_bf16)
    jax.block_until_ready(out_bf16)
    assert jnp.allclose(out_bf16, ref, atol=7.5e-2, rtol=7.5e-2)

    print("KERNEL_OK")
</pallas_src>

<mosaic_0001>
module attributes {stable_mosaic.version = 11 : i64} {
  func.func @_patch_embed_kernel(%arg0: i32, %arg1: i32, %arg2: memref<8x128xf32, #tpu.memory_space<vmem>>, %arg3: memref<128x128xf32, #tpu.memory_space<vmem>>, %arg4: memref<1x128xf32, #tpu.memory_space<vmem>>, %arg5: memref<8x128xf32, #tpu.memory_space<vmem>>) attributes {dimension_semantics = [#tpu.dimension_semantics<parallel>, #tpu.dimension_semantics<parallel>], iteration_bounds = array<i64: 1, 2>, scalar_prefetch = 0 : i64, scratch_operands = 0 : i64, tpu.core_type = #tpu.core_type<tc>, window_params = [{transform_indices = @transform_0, window_bounds = array<i64: 8, 128>}, {transform_indices = @transform_1, window_bounds = array<i64: 128, 128>}, {transform_indices = @transform_2, window_bounds = array<i64: 1, 128>}, {transform_indices = @transform_3, window_bounds = array<i64: 8, 128>}]} {
    %c0 = arith.constant 0 : index
    %c0_0 = arith.constant 0 : index
    %0 = vector.load %arg2[%c0, %c0_0] : memref<8x128xf32, #tpu.memory_space<vmem>>, vector<8x128xf32>
    %c0_1 = arith.constant 0 : index
    %c0_2 = arith.constant 0 : index
    %1 = vector.load %arg3[%c0_1, %c0_2] : memref<128x128xf32, #tpu.memory_space<vmem>>, vector<128x128xf32>
    %cst = arith.constant dense<0.000000e+00> : vector<8x128xf32>
    %2 = tpu.matmul %0, %1, %cst {dimension_numbers = #tpu.dot_dimension_numbers<[1], [0], [0], [1], [0, 0, 1, 1], [], []>} : vector<8x128xf32>, vector<128x128xf32>, vector<8x128xf32> -> vector<8x128xf32>
    %c0_3 = arith.constant 0 : index
    %c0_4 = arith.constant 0 : index
    %3 = vector.load %arg4[%c0_3, %c0_4] : memref<1x128xf32, #tpu.memory_space<vmem>>, vector<1x128xf32>
    %4 = vector.broadcast %3 : vector<1x128xf32> to vector<8x128xf32>
    %5 = arith.addf %2, %4 : vector<8x128xf32>
    %c0_5 = arith.constant 0 : index
    %c0_6 = arith.constant 0 : index
    %6 = vector.load %arg5[%c0_5, %c0_6] : memref<8x128xf32, #tpu.memory_space<vmem>>, vector<8x128xf32>
    tpu.vector_store %arg5[%c0_5, %c0_6], %5 {strides = array<i32>} : memref<8x128xf32, #tpu.memory_space<vmem>>, vector<8x128xf32>,
    return
  }
  func.func @transform_0(%arg0: i32, %arg1: i32) -> (i32, i32) {
    %c0_i32 = arith.constant 0 : i32
    %c0_i32_0 = arith.constant 0 : i32
    return %arg1, %c0_i32 : i32, i32
  }
  func.func @transform_1(%arg0: i32, %arg1: i32) -> (i32, i32) {
    %c0_i32 = arith.constant 0 : i32
    %c0_i32_0 = arith.constant 0 : i32
    return %c0_i32, %arg0 : i32, i32
  }
  func.func @transform_2(%arg0: i32, %arg1: i32) -> (i32, i32) {
    %c0_i32 = arith.constant 0 : i32
    %c0_i32_0 = arith.constant 0 : i32
    return %c0_i32, %arg0 : i32, i32
  }
  func.func @transform_3(%arg0: i32, %arg1: i32) -> (i32, i32) {
    %c0_i32 = arith.constant 0 : i32
    return %arg1, %arg0 : i32, i32
  }
}

</mosaic_0001>

<llo_original>
// kernel: _lambda_.1
$region0: #{_lambda_.1}
  #allocation0 [shape = 'u32[]', space=smem, size = 0x4, offset = 0x4, fixed_abs, tag = 'smem constant byte address 0x4 - core index']
  #allocation1 [shape = 'u32[144,128]{1,0:T(1,128)}', space=vmem, size = 0x12000, scoped, tag = 'internal scratch']
  %s0 = inlined_call_operand.vmem [shape: f32[16,128], index: 0, kind: input, shape index: {}]
  %s1 = inlined_call_operand.vmem [shape: f32[128,128], index: 1, kind: input, shape index: {}]
  %s2 = inlined_call_operand.vmem [shape: f32[1,128], index: 2, kind: input, shape index: {}]
  %s3 = inlined_call_operand.hbm [shape: f32[16,128], index: 3, kind: output, shape index: {}]
  %s4 = sld [smem:[#allocation0]]
  $region45: #{_lambda_.1} parent=0
    _
  %s6 = ssub.s32 1, %s4
  %s7 = scalar_select 0, %s6, %s4
  $region1: #{_lambda_.1} parent=0
    #allocation2 [shape = 'u8[8192]{0}', space=vmem, size = 0x2000, scoped, tag = 'output window, operand 0']
    #allocation3 [shape = 's32[2]{0}', space=sflag, size = 0x8, scoped, tag = 'scoped memory for _lambda_.1']
    %8 = vsyncpa [#allocation3], 0
    %s9 = scalar_lea.sflag [#allocation3], 1
    %10 = vsyncpa %s9, 0
    loop: start=0, step=1, limit=4
    $region2: #{_lambda_.1} parent=1 // loop_pre_header
      _
    $region3: #{_lambda_.1} parent=1 // loop_header
      %s12 = sphi 0, %s16
      %p13 = scmp.ge.s32.totalorder %s12, 4
      %s19 = sphi 0, %s31
      %s20 = sphi 0, %s27
      %s21 = sphi 0, %s19
      %s22 = sphi 0, %s20
      %s23 = sphi 0, %s21
      %s24 = sphi 0, %s22
      %s34 = sphi 0, %s36
      %s37 = sphi 0, %s34
      %s38 = sphi 0, %s37
      %s54 = sphi 0, %s38
      %s60 = sphi 0, %s62
      %s63 = sphi 0, %s60
      %s64 = sphi 0, %s63
      %s80 = sphi 0, %s64
      %s86 = sphi 0, %s88
      %s89 = sphi 0, %s86
      %s90 = sphi 0, %s89
      %s106 = sphi 0, %s90
      %s114 = sphi 0, %s116
      %s117 = sphi 0, %s114
      %s118 = sphi 0, %s117
      %s134 = sphi 0, %s118
    $region4: #{_lambda_.1} parent=1 // loop_header_branch
      %15 = sbr.rel (%p13) target = $region8
    $region5: #{_lambda_.1} parent=1 // loop_body
      %s17 = ssub.s32 %s12, 1
      %s18 = ssub.s32 %s12, 2
      %s25 = sadd.s32 1, %s20
      %p26 = scmp.ge.s32.totalorder %s25, 2
      %s27 = scalar_select %p26, 0, %s25
      %s28 = sadd.s32 1, %s19
      %s29 = scalar_select %p26, %s28, %s19
      %p30 = scmp.ge.s32.totalorder %s29, 1
      %s31 = scalar_select %p30, 0, %s29
      %s32 = ssub.s32 %s20, %s27
      %p33 = scmp.eq.s32.totalorder %s32, 0
      %s35 = sadd.s32 %s34, 1
      %s36 = scalar_select %p33, %s34, %s35
      %p39 = pneg %p33
      %p40 = scmp.eq.s32.totalorder %s12, 1
      %p41 = por %p39, %p40
      %p42 = scmp.ne.s32.totalorder %s34, %s37
      %p43 = scmp.eq.s32.totalorder %s12, 0
      %p44 = por %p42, %p43
      %p45 = scmp.ne.s32.totalorder %s34, %s37
      %p46 = scmp.eq.s32.totalorder %s17, 1
      %p47 = por %p45, %p46
      %p48 = scmp.ne.s32.totalorder %s37, %s38
      %p49 = scmp.eq.s32.totalorder %s17, 0
      %p50 = por %p48, %p49
      %p51 = scmp.ne.s32.totalorder %s37, %s38
      %p52 = scmp.eq.s32.totalorder %s18, 1
      %p53 = por %p51, %p52
      %p55 = scmp.ne.s32.totalorder %s38, %s54
      %p56 = scmp.eq.s32.totalorder %s18, 0
      %p57 = por %p55, %p56
      %s58 = ssub.s32 %s19, %s31
      %p59 = scmp.eq.s32.totalorder %s58, 0
      %s61 = sadd.s32 %s60, 1
      %s62 = scalar_select %p59, %s60, %s61
      %p65 = pneg %p59
      %p66 = scmp.eq.s32.totalorder %s12, 1
      %p67 = por %p65, %p66
      %p68 = scmp.ne.s32.totalorder %s60, %s63
      %p69 = scmp.eq.s32.totalorder %s12, 0
      %p70 = por %p68, %p69
      %p71 = scmp.ne.s32.totalorder %s60, %s63
      %p72 = scmp.eq.s32.totalorder %s17, 1
      %p73 = por %p71, %p72
      %p74 = scmp.ne.s32.totalorder %s63, %s64
      %p75 = scmp.eq.s32.totalorder %s17, 0
      %p76 = por %p74, %p75
      %p77 = scmp.ne.s32.totalorder %s63, %s64
      %p78 = scmp.eq.s32.totalorder %s18, 1
      %p79 = por %p77, %p78
      %p81 = scmp.ne.s32.totalorder %s64, %s80
      %p82 = scmp.eq.s32.totalorder %s18, 0
      %p83 = por %p81, %p82
      %s84 = ssub.s32 %s19, %s31
      %p85 = scmp.eq.s32.totalorder %s84, 0
      %s87 = sadd.s32 %s86, 1
      %s88 = scalar_select %p85, %s86, %s87
      %p91 = pneg %p85
      %p92 = scmp.eq.s32.totalorder %s12, 1
      %p93 = por %p91, %p92
      %p94 = scmp.ne.s32.totalorder %s86, %s89
      %p95 = scmp.eq.s32.totalorder %s12, 0
      %p96 = por %p94, %p95
      %p97 = scmp.ne.s32.totalorder %s86, %s89
      %p98 = scmp.eq.s32.totalorder %s17, 1
      %p99 = por %p97, %p98
      %p100 = scmp.ne.s32.totalorder %s89, %s90
      %p101 = scmp.eq.s32.totalorder %s17, 0
      %p102 = por %p100, %p101
      %p103 = scmp.ne.s32.totalorder %s89, %s90
      %p104 = scmp.eq.s32.totalorder %s18, 1
      %p105 = por %p103, %p104
      %p107 = scmp.ne.s32.totalorder %s90, %s106
      %p108 = scmp.eq.s32.totalorder %s18, 0
      %p109 = por %p107, %p108
      %s110 = ssub.s32 %s20, %s27
      %s111 = ssub.s32 %s19, %s31
      %s112 = sor.u32 %s110, %s111
      %p113 = scmp.eq.s32.totalorder %s112, 0
      %s115 = sadd.s32 %s114, 1
      %s116 = scalar_select %p113, %s114, %s115
      %p119 = pneg %p113
      %p120 = scmp.eq.s32.totalorder %s12, 1
      %p121 = por %p119, %p120
      %p122 = scmp.ne.s32.totalorder %s114, %s117
      %p123 = scmp.eq.s32.totalorder %s12, 0
      %p124 = por %p122, %p123
      %p125 = scmp.ne.s32.totalorder %s114, %s117
      %p126 = scmp.eq.s32.totalorder %s17, 1
      %p127 = por %p125, %p126
      %p128 = scmp.ne.s32.totalorder %s117, %s118
      %p129 = scmp.eq.s32.totalorder %s17, 0
      %p130 = por %p128, %p129
      %p131 = scmp.ne.s32.totalorder %s117, %s118
      %p132 = scmp.eq.s32.totalorder %s18, 1
      %p133 = por %p131, %p132
      %p135 = scmp.ne.s32.totalorder %s118, %s134
      %p136 = scmp.eq.s32.totalorder %s18, 0
      %p137 = por %p135, %p136
      %p138 = scmp.le.s32.totalorder 1, %s12
      %p139 = scmp.lt.s32.totalorder %s12, 3
      %p140 = pnand %p138, %p139
      %p141 = pneg %p140
      // Predicated region
      $region9: #{_lambda_.1} parent=5 // pred_check
        _
      $region10: #{_lambda_.1} parent=5 // pred_check_branch
        %143 = sbr.rel (%p140) target = $region12
      $region11: #{_lambda_.1} parent=5 // pred_region
        %s144 = ssub.s32 %s12, 1
        // Predicated region
        $region13: #{_lambda_.1} parent=11 // pred_check
          %p145 = pneg %p76
        $region14: #{_lambda_.1} parent=11 // pred_check_branch
          %147 = sbr.rel (%p145) target = $region16
        $region15: #{_lambda_.1} parent=11 // pred_region
          %p148 = scmp.lt.s32.totalorder %s21, 0
          %s149 = scalar_select %p148, %s21, 0
          %s150 = smul.addr %s149, 8
          %s151 = scalar_lea.vmem %s1, %s150
        $region16: #{_lambda_.1} parent=11 // pred_fallthru
          _
        // Predicated region
        $region17: #{_lambda_.1} parent=11 // pred_check
          %p152 = pneg %p102
        $region18: #{_lambda_.1} parent=11 // pred_check_branch
          %154 = sbr.rel (%p152) target = $region20
        $region19: #{_lambda_.1} parent=11 // pred_region
          %p155 = scmp.lt.s32.totalorder %s21, 0
          %s156 = scalar_select %p155, %s21, 0
          %s157 = scalar_lea.vmem %s2, %s156
        $region20: #{_lambda_.1} parent=11 // pred_fallthru
          _
      $region12: #{_lambda_.1} parent=5 // pred_fallthru
        _
      %p158 = scmp.lt.s32.totalorder %s12, 2
      // Predicated region
      $region21: #{_lambda_.1} parent=5 // pred_check
        %p159 = pneg %p158
      $region22: #{_lambda_.1} parent=5 // pred_check_branch
        %161 = sbr.rel (%p159) target = $region24
      $region23: #{_lambda_.1} parent=5 // pred_region
        // Predicated region
        $region25: #{_lambda_.1} parent=23 // pred_check
          %p162 = pneg %p44
        $region26: #{_lambda_.1} parent=23 // pred_check_branch
          %164 = sbr.rel (%p162) target = $region28
        $region27: #{_lambda_.1} parent=23 // pred_region
          %p165 = scmp.lt.s32.totalorder %s20, 1
          %s166 = scalar_select %p165, %s20, 1
          %s167 = smul.addr %s166, 8
          %s168 = scalar_lea.vmem %s0, %s167
        $region28: #{_lambda_.1} parent=23 // pred_fallthru
          _
      $region24: #{_lambda_.1} parent=5 // pred_fallthru
        _
      %p169 = scmp.le.s32.totalorder 1, %s12
      %p170 = scmp.lt.s32.totalorder %s12, 3
      %p171 = pnand %p169, %p170
      %p172 = pneg %p171
      // Predicated region
      $region29: #{_lambda_.1} parent=5 // pred_check
        _
      $region30: #{_lambda_.1} parent=5 // pred_check_branch
        %174 = sbr.rel (%p171) target = $region32
      $region31: #{_lambda_.1} parent=5 // pred_region
        %s175 = ssub.s32 %s12, 1
        %p176 = scmp.lt.s32.totalorder %s22, 1
        %s177 = scalar_select %p176, %s22, 1
        %s178 = smul.addr %s177, 8
        %s179 = scalar_lea.vmem %s0, %s178
        %p180 = pneg %p50
        %p181 = pneg %p47
        %p182 = scmp.lt.s32.totalorder %s21, 0
        %s183 = scalar_select %p182, %s21, 0
        %s184 = smul.addr %s183, 8
        %s185 = scalar_lea.vmem %s1, %s184
        %p186 = pneg %p76
        %p187 = pneg %p73
        %p188 = scmp.lt.s32.totalorder %s21, 0
        %s189 = scalar_select %p188, %s21, 0
        %s190 = scalar_lea.vmem %s2, %s189
        %p191 = pneg %p102
        %p192 = pneg %p99
        %p193 = pneg %p130
        %p194 = pneg %p127
        %s195 = sand.u32 %s117, 1
        %s196 = scalar_lea.sflag [#allocation3], %s195
        %s197 = sand.u32 %s117, 1
        %s198 = smul.addr %s197, 8
        %s199 = scalar_lea.vmem [#allocation2], %s198
        %p200 = scmp.lt.s32.totalorder %s22, 1
        %s201 = scalar_select %p200, %s22, 1
        %s202 = smul.addr %s201, 8
        %s203 = scalar_lea.vmem %s0, %s202
        %p204 = scmp.lt.s32.totalorder %s21, 0
        %s205 = scalar_select %p204, %s21, 0
        %s206 = smul.addr %s205, 8
        %s207 = scalar_lea.vmem %s1, %s206
        %p208 = scmp.lt.s32.totalorder %s21, 0
        %s209 = scalar_select %p208, %s21, 0
        %s210 = scalar_lea.vmem %s2, %s209
        %v211 = vld [vmem:[%s203] sm:$0xff]
        %v212 = vld [vmem:[%s207] sm:$0xff]
        %v213 = vld [vmem:[%s207 + $0x8] sm:$0xff]
        %v214 = vld [vmem:[%s207 + $0x10] sm:$0xff]
        %v215 = vld [vmem:[%s207 + $0x18] sm:$0xff]
        %v216 = vld [vmem:[%s207 + $0x20] sm:$0xff]
        %v217 = vld [vmem:[%s207 + $0x28] sm:$0xff]
        %v218 = vld [vmem:[%s207 + $0x30] sm:$0xff]
        %v219 = vld [vmem:[%s207 + $0x38] sm:$0xff]
        %v220 = vld [vmem:[%s207 + $0x40] sm:$0xff]
        %v221 = vld [vmem:[%s207 + $0x48] sm:$0xff]
        %v222 = vld [vmem:[%s207 + $0x50] sm:$0xff]
        %v223 = vld [vmem:[%s207 + $0x58] sm:$0xff]
        %v224 = vld [vmem:[%s207 + $0x60] sm:$0xff]
        %v225 = vld [vmem:[%s207 + $0x68] sm:$0xff]
        %v226 = vld [vmem:[%s207 + $0x70] sm:$0xff]
        %v227 = vld [vmem:[%s207 + $0x78] sm:$0xff]
        %v228 = vld [vmem:[%s210] sm:$0x1]
        %v230 = vlaneseq
        %v231 = vshrl.u32 %v230, 7
        %v232 = vsub.s32 0, %v231
        %v233 = vrot.slane %v228, %v232
        %235 = vmatprep.subr.mxu0 0.0
        %236 = vmatpush1.msra.mxu0 %v212
        %237 = vmatprep.subr.mxu0 0.0
        %238 = vmatpush1.msra.mxu0 %v213
        %239 = vmatprep.subr.mxu0 0.0
        %240 = vmatpush1.msra.mxu0 %v214
        %241 = vmatprep.subr.mxu0 0.0
        %242 = vmatpush1.msra.mxu0 %v215
        %243 = vmatprep.subr.mxu0 0.0
        %244 = vmatpush1.msra.mxu0 %v216
        %245 = vmatprep.subr.mxu0 0.0
        %246 = vmatpush1.msra.mxu0 %v217
        %247 = vmatprep.subr.mxu0 0.0
        %248 = vmatpush1.msra.mxu0 %v218
        %249 = vmatprep.subr.mxu0 0.0
        %250 = vmatpush1.msra.mxu0 %v219
        %251 = vmatprep.subr.mxu0 0.0
        %252 = vmatpush1.msra.mxu0 %v220
        %253 = vmatprep.subr.mxu0 0.0
        %254 = vmatpush1.msra.mxu0 %v221
        %255 = vmatprep.subr.mxu0 0.0
        %256 = vmatpush1.msra.mxu0 %v222
        %257 = vmatprep.subr.mxu0 0.0
        %258 = vmatpush1.msra.mxu0 %v223
        %259 = vmatprep.subr.mxu0 0.0
        %260 = vmatpush1.msra.mxu0 %v224
        %261 = vmatprep.subr.mxu0 0.0
        %262 = vmatpush1.msra.mxu0 %v225
        %263 = vmatprep.subr.mxu0 0.0
        %264 = vmatpush1.msra.mxu0 %v226
        %265 = vmatprep.subr.mxu0 0.0
        %266 = vmatpush1.msra.mxu0 %v227
        %267 = vmatprep.subr.mxu0 0.0
        %268 = vmatpush1.msra.mxu0 0.0
        %269 = vmatprep.subr.mxu0 0.0
        %270 = vmatpush1.msra.mxu0 0.0
        %271 = vmatprep.subr.mxu0 0.0
        %272 = vmatpush1.msra.mxu0 0.0
        %273 = vmatprep.subr.mxu0 0.0
        %274 = vmatpush1.msra.mxu0 0.0
        %275 = vmatprep.subr.mxu0 0.0
        %276 = vmatpush1.msra.mxu0 0.0
        %277 = vmatprep.subr.mxu0 0.0
        %278 = vmatpush1.msra.mxu0 0.0
        %279 = vmatprep.subr.mxu0 0.0
        %280 = vmatpush1.msra.mxu0 0.0
        %281 = vmatprep.subr.mxu0 0.0
        %282 = vmatpush1.msra.mxu0 0.0
        %283 = vmatprep.subr.mxu0 0.0
        %284 = vmatpush1.msra.mxu0 0.0
        %285 = vmatprep.subr.mxu0 0.0
        %286 = vmatpush1.msra.mxu0 0.0
        %287 = vmatprep.subr.mxu0 0.0
        %288 = vmatpush1.msra.mxu0 0.0
        %289 = vmatprep.subr.mxu0 0.0
        %290 = vmatpush1.msra.mxu0 0.0
        %291 = vmatprep.subr.mxu0 0.0
        %292 = vmatpush1.msra.mxu0 0.0
        %293 = vmatprep.subr.mxu0 0.0
        %294 = vmatpush1.msra.mxu0 0.0
        %295 = vmatprep.subr.mxu0 0.0
        %296 = vmatpush1.msra.mxu0 0.0
        %297 = vmatprep.subr.mxu0 0.0
        %298 = vmatpush1.msra.mxu0 0.0
        %299 = vmatprep.mubr.f32.mxu0 0.0
        %300 = vmatmul.mubr.f32.gmra.mrb[0].mxu0 %v211
        %v301 = vpop.f32.mrb[0].mxu0
        %v302 = vadd.f32 %v233, %v301
        %v303 = vpop.f32.mrb[0].mxu0
        %304 = vdwg.mxu0
        %305 = vst [vmem:[%s199] sm:$0xff] %v302
        %s306 = sand.u32 %s117, 1
        %s307 = scalar_lea.sflag [#allocation3], %s306
        %s308 = sand.u32 %s117, 1
        %s309 = smul.addr %s308, 8
        %s310 = scalar_lea.vmem [#allocation2], %s309
        // Predicated region
        $region33: #{_lambda_.1} parent=31 // pred_check
          %p311 = pneg %p127
        $region34: #{_lambda_.1} parent=31 // pred_check_branch
          %313 = sbr.rel (%p311) target = $region36
        $region35: #{_lambda_.1} parent=31 // pred_region
          %s315 = ssub.s32 128, 128
          %316 = vsyncadd %s307, %s315
          %s317 = sadd.s32 %s21, %s22
          %s318 = smul.addr %s317, 128
          %s319 = scalar_lea.hbm %s3, %s318
          %s321 = sshll.u32 %s310, 4
          %s322 = int_to_ptr.vmem [resolvable:$true] %s321
          %324 = dma.vmem_to_hbm [thread:$0]  %s322, 128, %s319, %s307
        $region36: #{_lambda_.1} parent=31 // pred_fallthru
          _
      $region32: #{_lambda_.1} parent=5 // pred_fallthru
        _
      %p325 = scmp.le.s32.totalorder 2, %s12
      // Predicated region
      $region37: #{_lambda_.1} parent=5 // pred_check
        %p326 = pneg %p325
      $region38: #{_lambda_.1} parent=5 // pred_check_branch
        %328 = sbr.rel (%p326) target = $region40
      $region39: #{_lambda_.1} parent=5 // pred_region
        %s329 = ssub.s32 %s12, 2
        // Predicated region
        $region41: #{_lambda_.1} parent=39 // pred_check
          %p330 = pneg %p133
        $region42: #{_lambda_.1} parent=39 // pred_check_branch
          %332 = sbr.rel (%p330) target = $region44
        $region43: #{_lambda_.1} parent=39 // pred_region
          %s333 = sand.u32 %s118, 1
          %s334 = scalar_lea.sflag [#allocation3], %s333
          %s335 = sand.u32 %s118, 1
          %s336 = smul.addr %s335, 8
          %s337 = scalar_lea.vmem [#allocation2], %s336
          %338 = dma.done %s334, 128
        $region44: #{_lambda_.1} parent=39 // pred_fallthru
          _
      $region40: #{_lambda_.1} parent=5 // pred_fallthru
        _
    $region6: #{_lambda_.1} parent=1 // loop_footer
      %s16 = sadd.s32 1, %s12
    $region7: #{_lambda_.1} parent=1 // loop_footer_branch
      %11 = sbr.rel target = $region3
    $region8: #{_lambda_.1} parent=1 // loop_exit
      _
    %339 = vsyncpa [#allocation3], 1
    %s340 = scalar_lea.sflag [#allocation3], 1
    %341 = vsyncpa %s340, 1

</llo_original>
